<compile_context>
chip_gen: v7x
topology: tpu7x:2x2x1
jax: 0.10.0
libtpu: 0.0.40
codegen_flags: <defaults>
</compile_context>

<pallas_src>
import functools

import jax
import jax.numpy as jnp
from jax.experimental import pallas as pl
from jax.experimental.pallas import tpu as pltpu  # noqa: F401  (TPU backend)


# ---------------------------------------------------------------------------
# Kernel: fused softmax + log-softmax over the whole logits slab.
# ---------------------------------------------------------------------------
def _softmax_logsoftmax_kernel(logits_ref, probs_ref, logp_ref):
    x = logits_ref[...].astype(jnp.float32)
    m = jnp.max(x)                      # global max (scalar)
    shifted = x - m
    e = jnp.exp(shifted)
    s = jnp.sum(e)                      # global sum (scalar)
    probs_ref[...] = e / s              # exact divide: keeps 1e-6 tolerance
    logp_ref[...] = shifted - jnp.log(s)


def _make_probs_and_logp(num_goals):
    """Builds a callable: logits (N,) -> (probs (N,), log_probs (N,)) in ONE
    pallas_call. The logits are presented as a lane-dense 2-D slab."""
    if num_goals % 128 == 0:
        shape2d = (num_goals // 128, 128)
    else:
        shape2d = (1, num_goals)        # full-array block is always legal

    def call(logits):
        x2d = logits.reshape(shape2d)
        probs2d, logp2d = pl.pallas_call(
            _softmax_logsoftmax_kernel,
            out_shape=(
                jax.ShapeDtypeStruct(shape2d, jnp.float32),
                jax.ShapeDtypeStruct(shape2d, jnp.float32),
            ),
            in_specs=[pl.BlockSpec(shape2d, lambda: (0, 0))],
            out_specs=(
                pl.BlockSpec(shape2d, lambda: (0, 0)),
                pl.BlockSpec(shape2d, lambda: (0, 0)),
            ),
        )(x2d)
        return probs2d.reshape(num_goals), logp2d.reshape(num_goals)

    return call


# ---------------------------------------------------------------------------
# Module wrapper (mirrors the PyTorch TaskGenerator)
# ---------------------------------------------------------------------------
class TaskGenerator:
    """Generates task parameters (goal locations) — Pallas/JAX version."""

    def __init__(self, grid_size):
        self.grid_size = grid_size
        self.num_possible_goals = grid_size * grid_size
        # Deterministic parameter init, matching nn.Parameter(torch.zeros(...)).
        self.goal_logits = jnp.zeros((self.num_possible_goals,), dtype=jnp.float32)

        fused = _make_probs_and_logp(self.num_possible_goals)
        gs = grid_size

        # get_distribution(): one jitted call around the single fused kernel.
        self._probs_fn = jax.jit(lambda logits: fused(logits)[0])

        # sample_goal(): one jitted executable = fused kernel + gumbel-argmax
        # + row/col math, all on device (no host syncs inside).
        def _sample(logits, key):
            _, logp = fused(logits)
            goal_index = jax.random.categorical(key, logits)
            log_prob = logp[goal_index]
            row = goal_index // gs
            col = goal_index % gs
            return row, col, goal_index, log_prob

        self._sample_fn = jax.jit(_sample)

    def forward(self):
        # Identity: no kernel launch, no HBM round trip.
        return self.goal_logits

    def get_distribution(self):
        """Returns the probability distribution over goals (softmax in-kernel)."""
        return self._probs_fn(self.goal_logits)

    def sample_goal(self, key):
        """Samples a goal location based on current logits."""
        row, col, goal_index, log_prob = self._sample_fn(self.goal_logits, key)
        # Return device scalars; callers may convert to Python ints if needed.
        return ((row, col), goal_index, log_prob)


# ---------------------------------------------------------------------------
# Demo / self-test
# ---------------------------------------------------------------------------
if __name__ == "__main__":
    grid_size = 16  # -> 256 possible goals (lane-aligned: 2 * 128)
    gen = TaskGenerator(grid_size)
    key = jax.random.PRNGKey(0)

    # forward(): identity pass-through of the parameter.
    logits = gen.forward()
    jax.block_until_ready(logits)
    assert logits.shape == (grid_size * grid_size,)
    assert jnp.allclose(logits, gen.goal_logits)

    # get_distribution(): softmax of zeros -> uniform distribution.
    probs = gen.get_distribution()
    jax.block_until_ready(probs)
    assert jnp.allclose(jnp.sum(probs), 1.0, atol=1e-5)
    assert jnp.allclose(
        probs, jnp.full_like(probs, 1.0 / gen.num_possible_goals), atol=1e-6
    )

    # Cross-check the fused in-kernel softmax / log-softmax against jax.nn on
    # non-trivial (deterministic, PRNGKey(0)-derived) logits.
    rand_logits = jax.random.normal(key, (gen.num_possible_goals,), dtype=jnp.float32)
    gen.goal_logits = rand_logits
    probs_rand = gen.get_distribution()
    jax.block_until_ready(probs_rand)
    ref = jax.nn.softmax(rand_logits)
    assert jnp.allclose(probs_rand, ref, atol=1e-6)

    # sample_goal(): single jitted launch (fused kernel + categorical + index
    # math), log-prob comes straight from the in-kernel log-softmax.
    (row_col, goal_index, log_prob) = gen.sample_goal(key)
    jax.block_until_ready(log_prob)
    row_i, col_i = int(row_col[0]), int(row_col[1])      # host-side only, in test
    gi = int(goal_index)
    assert 0 <= row_i < grid_size and 0 <= col_i < grid_size
    assert row_i * grid_size + col_i == gi
    ref_logp = jax.nn.log_softmax(rand_logits)[gi]
    assert jnp.allclose(log_prob, ref_logp, atol=1e-5)

    print("KERNEL_OK")
</pallas_src>

<mosaic_0001>
module attributes {stable_mosaic.version = 11 : i64} {
  func.func @_softmax_logsoftmax_kernel(%arg0: memref<2x128xf32, #tpu.memory_space<vmem>>, %arg1: memref<2x128xf32, #tpu.memory_space<vmem>>, %arg2: memref<2x128xf32, #tpu.memory_space<vmem>>) attributes {dimension_semantics = [], scalar_prefetch = 0 : i64, scratch_operands = 0 : i64, tpu.core_type = #tpu.core_type<tc>} {
    %c0 = arith.constant 0 : index
    %c0_0 = arith.constant 0 : index
    %0 = vector.load %arg0[%c0, %c0_0] : memref<2x128xf32, #tpu.memory_space<vmem>>, vector<2x128xf32>
    %1 = vector.shape_cast %0 : vector<2x128xf32> to vector<1x2x128xf32>
    %cst = arith.constant dense<0xFF800000> : vector<1xf32>
    %2 = vector.multi_reduction <maximumf>, %1, %cst [1, 2] : vector<1x2x128xf32> to vector<1xf32>
    %3 = vector.shape_cast %2 : vector<1xf32> to vector<1x1x1xf32>
    %4 = vector.extract %3[0, 0, 0] : f32 from vector<1x1x1xf32>
    %5 = vector.broadcast %4 : f32 to vector<2x128xf32>
    %6 = arith.subf %0, %5 : vector<2x128xf32>
    %7 = math.exp %6 : vector<2x128xf32>
    %8 = vector.shape_cast %7 : vector<2x128xf32> to vector<1x2x128xf32>
    %cst_1 = arith.constant dense<0.000000e+00> : vector<1xf32>
    %9 = vector.multi_reduction <add>, %8, %cst_1 [1, 2] : vector<1x2x128xf32> to vector<1xf32>
    %10 = vector.shape_cast %9 : vector<1xf32> to vector<1x1x1xf32>
    %11 = vector.extract %10[0, 0, 0] : f32 from vector<1x1x1xf32>
    %12 = vector.broadcast %11 : f32 to vector<2x128xf32>
    %13 = arith.divf %7, %12 : vector<2x128xf32>
    %c0_2 = arith.constant 0 : index
    %c0_3 = arith.constant 0 : index
    %14 = vector.load %arg1[%c0_2, %c0_3] : memref<2x128xf32, #tpu.memory_space<vmem>>, vector<2x128xf32>
    tpu.vector_store %arg1[%c0_2, %c0_3], %13 {strides = array<i32>} : memref<2x128xf32, #tpu.memory_space<vmem>>, vector<2x128xf32>,
    %15 = math.log %11 : f32
    %16 = vector.broadcast %15 : f32 to vector<2x128xf32>
    %17 = arith.subf %6, %16 : vector<2x128xf32>
    %c0_4 = arith.constant 0 : index
    %c0_5 = arith.constant 0 : index
    %18 = vector.load %arg2[%c0_4, %c0_5] : memref<2x128xf32, #tpu.memory_space<vmem>>, vector<2x128xf32>
    tpu.vector_store %arg2[%c0_4, %c0_5], %17 {strides = array<i32>} : memref<2x128xf32, #tpu.memory_space<vmem>>, vector<2x128xf32>,
    return
  }
}

</mosaic_0001>

<llo_original>
// kernel: _lambda_.1
$region0: #{_lambda_.1}
  #allocation0 [shape = 'u32[]', space=smem, size = 0x4, offset = 0x4, fixed_abs, tag = 'smem constant byte address 0x4 - core index']
  #allocation1 [shape = 'u32[144,128]{1,0:T(1,128)}', space=vmem, size = 0x12000, scoped, tag = 'internal scratch']
  %s0 = inlined_call_operand.vmem [shape: f32[2,128], index: 0, kind: input, shape index: {}]
  %s1 = inlined_call_operand.hbm [shape: f32[2,128], index: 1, kind: output, shape index: {0}]
  %s2 = inlined_call_operand.hbm [shape: f32[2,128], index: 2, kind: output, shape index: {1}]
  %3 = xla_tuple %s1, %s2
  %s4 = sld [smem:[#allocation0]]
  $region22: #{_lambda_.1} parent=0
    _
  %s6 = ssub.s32 1, %s4
  %s7 = scalar_select 0, %s6, %s4
  $region1: #{_lambda_.1} parent=0
    #allocation2 [shape = 'u8[1024]{0}', space=vmem, size = 0x400, scoped, tag = 'output window, operand 0, single buffered']
    #allocation3 [shape = 's32[1]{0}', space=sflag, size = 0x4, scoped, tag = 'scoped memory for _lambda_.1']
    #allocation4 [shape = 'u8[1024]{0}', space=vmem, size = 0x400, scoped, tag = 'output window, operand 1, single buffered']
    #allocation5 [shape = 's32[1]{0}', space=sflag, size = 0x4, scoped, tag = 'scoped memory for _lambda_.1']
    %8 = vsyncpa [#allocation3], 0
    %9 = vsyncpa [#allocation5], 0
    // Predicated region
    $region2: #{_lambda_.1} parent=1 // pred_check
      _
    $region3: #{_lambda_.1} parent=1 // pred_check_branch
      %11 = sbr.rel (0) target = $region5
    $region4: #{_lambda_.1} parent=1 // pred_region
      _
    $region5: #{_lambda_.1} parent=1 // pred_fallthru
      _
    %v12 = vld [vmem:[%s0] sm:$0x3]
    %vm13 = vcmask 1041408
    %v14 = vsel %vm13, %v12, -inf
    %15 = vmax.xlane.f32.xlu0 %v14
    %v16 = vpop.xlane.xlu0 %15
    %v17 = vrot.slane %v16, 4
    %v18 = vmax.f32 %v16, %v17
    %v19 = vrot.slane %v18, 2
    %v20 = vmax.f32 %v18, %v19
    %v21 = vrot.slane %v20, 1
    %v22 = vmax.f32 %v20, %v21
    %s23 = vtos %v22
    %v24 = vstv %s23
    %v25 = vsub.f32 %v12, %v24
    %v26 = vmul.f32 %v25, 1.442695
    %v27 = vpow.pop %v26
    %v28 = vsel %vm13, %v27, 0.0
    %29 = vadd.xlane.f32.xlu0 %v28
    %v30 = vpop.xlane.xlu0 %29
    %v31 = vrot.slane %v30, 4
    %v32 = vadd.f32 %v30, %v31
    %v33 = vrot.slane %v32, 2
    %v34 = vadd.f32 %v32, %v33
    %v35 = vrot.slane %v34, 1
    %v36 = vadd.f32 %v34, %v35
    %s37 = vtos %v36
    %v38 = vstv %s37
    %v39 = vrcp.pop %v38
    %v40 = vmul.f32 %v27, %v39
    %41 = vst [vmem:[#allocation2] sm:$0x3] %v40
    %v42 = vstv %s37
    %v43 = vlog2.pop %v42
    %v44 = vmul.f32 %v43, 0.6931472
    %s45 = vtos %v44
    %v46 = vstv %s45
    %v47 = vsub.f32 %v25, %v46
    %48 = vst [vmem:[#allocation4] sm:$0x3] %v47
    // Predicated region
    $region6: #{_lambda_.1} parent=1 // pred_check
      _
    $region7: #{_lambda_.1} parent=1 // pred_check_branch
      %50 = sbr.rel (0) target = $region9
    $region8: #{_lambda_.1} parent=1 // pred_region
      %s52 = ssub.s32 32, 32
      %53 = vsyncadd [#allocation3], %s52
      %s55 = sshll.u32 [#allocation2], 4
      %s56 = int_to_ptr.vmem [resolvable:$true] %s55
      %58 = dma.vmem_to_hbm [thread:$0]  %s56, 32, %s1, [#allocation3]
    $region9: #{_lambda_.1} parent=1 // pred_fallthru
      _
    // Predicated region
    $region10: #{_lambda_.1} parent=1 // pred_check
      _
    $region11: #{_lambda_.1} parent=1 // pred_check_branch
      %60 = sbr.rel (0) target = $region13
    $region12: #{_lambda_.1} parent=1 // pred_region
      %s62 = ssub.s32 32, 32
      %63 = vsyncadd [#allocation5], %s62
      %s65 = sshll.u32 [#allocation4], 4
      %s66 = int_to_ptr.vmem [resolvable:$true] %s65
      %68 = dma.vmem_to_hbm [thread:$0]  %s66, 32, %s2, [#allocation5]
    $region13: #{_lambda_.1} parent=1 // pred_fallthru
      _
    // Predicated region
    $region14: #{_lambda_.1} parent=1 // pred_check
      _
    $region15: #{_lambda_.1} parent=1 // pred_check_branch
      %70 = sbr.rel (0) target = $region17
    $region16: #{_lambda_.1} parent=1 // pred_region
      %71 = dma.done [#allocation3], 32
    $region17: #{_lambda_.1} parent=1 // pred_fallthru
      _
    // Predicated region
    $region18: #{_lambda_.1} parent=1 // pred_check
      _
    $region19: #{_lambda_.1} parent=1 // pred_check_branch
      %73 = sbr.rel (0) target = $region21
    $region20: #{_lambda_.1} parent=1 // pred_region
      %74 = dma.done [#allocation5], 32
    $region21: #{_lambda_.1} parent=1 // pred_fallthru
      _
    %75 = vsyncpa [#allocation3], 1
    %76 = vsyncpa [#allocation5], 1

</llo_original>
